<compile_context>
chip_gen: v5e
topology: v5e:2x2
jax: 0.10.0
libtpu: 0.0.40
codegen_flags: <defaults>
</compile_context>

<pallas_src>
import functools

import jax
import jax.numpy as jnp
from jax.experimental import pallas as pl
from jax.experimental.pallas import tpu as pltpu


def _se_kernel(x_ref, w1t_ref, b1_ref, w2t_ref, b2_ref, o_ref, *, inv_hw):
    # x_ref:   (Bb, C, HW)   batch tile (full channel + spatial extent)
    # w1t_ref: (C, Cr)       first Linear weight, pre-transposed (in x out)
    # b1_ref:  (1, Cr)
    # w2t_ref: (Cr, C)       second Linear weight, pre-transposed
    # b2_ref:  (1, C)
    xb = x_ref[...]                                          # (Bb, C, HW)

    # Squeeze: global average pool over the spatial lanes.
    pooled = jnp.sum(xb, axis=-1) * inv_hw                   # (Bb, C)

    # Excitation: fc1 -> ReLU -> fc2 -> sigmoid, batched over the whole tile.
    h = jnp.dot(pooled, w1t_ref[...], preferred_element_type=jnp.float32)
    h = jnp.maximum(h + b1_ref[...], 0.0)                    # (Bb, Cr)
    y = jnp.dot(h, w2t_ref[...], preferred_element_type=jnp.float32)
    y = jax.nn.sigmoid(y + b2_ref[...])                      # (Bb, C)

    # Scale: broadcast the per-(batch, channel) gate across the spatial lanes.
    o_ref[...] = xb * y[:, :, None]


def _pick_batch_block(batch, bytes_per_elem, tile_budget):
    """Largest divisor of `batch` whose x-tile fits the budget while keeping
    at least 2 grid steps (so v7x can shard the parallel axis across TCs)."""
    best = 1
    for bb in range(1, batch + 1):
        if batch % bb != 0:
            continue
        if bb * bytes_per_elem > tile_budget:
            continue
        if batch // bb < 2 and batch > 1:
            continue
        best = bb
    return best


def se_layer(x_nchw, w1, b1, w2, b2, *, tile_budget_bytes=2 << 20):
    """x_nchw: (B, C, H, W) float32. w1: (Cr, C), b1: (Cr,), w2: (C, Cr), b2: (C,).
    Returns (B, C, H, W)."""
    B, C, H, W = x_nchw.shape
    Cr = w1.shape[0]
    HW = H * W

    # Merging trailing dims is a layout-compatible (free) reshape.
    x_flat = x_nchw.reshape(B, C, HW)

    # Pre-transpose weights so the kernel needs no in-kernel transposes.
    w1t = jnp.transpose(w1)            # (C, Cr)
    w2t = jnp.transpose(w2)            # (Cr, C)
    b1r = b1.reshape(1, Cr)
    b2r = b2.reshape(1, C)

    itemsize = x_flat.dtype.itemsize
    bytes_per_elem = C * HW * itemsize
    Bb = _pick_batch_block(B, bytes_per_elem, tile_budget_bytes)
    tile_bytes = Bb * bytes_per_elem

    # 2 double-buffered input tiles + 2 output tiles + weights + headroom.
    # Keep well under v7x's 64 MiB physical VMEM per TensorCore.
    vmem_limit = min(max(4 * tile_bytes + (4 << 20), 16 << 20), 48 << 20)

    cost = pl.CostEstimate(
        flops=2 * B * C * Cr * 2 + B * C * HW,     # two tiny matmuls + scale
        transcendentals=B * C,                      # sigmoid
        bytes_accessed=2 * B * C * HW * itemsize
        + (w1.size + b1.size + w2.size + b2.size) * itemsize,
    )

    kernel = functools.partial(_se_kernel, inv_hw=1.0 / HW)

    out_flat = pl.pallas_call(
        kernel,
        out_shape=jax.ShapeDtypeStruct((B, C, HW), x_flat.dtype),
        grid_spec=pltpu.PrefetchScalarGridSpec(
            num_scalar_prefetch=0,
            grid=(B // Bb,),
            in_specs=[
                pl.BlockSpec((Bb, C, HW), lambda b: (b, 0, 0)),
                # Constant block indices -> weights stay resident across steps.
                pl.BlockSpec((C, Cr), lambda b: (0, 0)),
                pl.BlockSpec((1, Cr), lambda b: (0, 0)),
                pl.BlockSpec((Cr, C), lambda b: (0, 0)),
                pl.BlockSpec((1, C), lambda b: (0, 0)),
            ],
            out_specs=pl.BlockSpec((Bb, C, HW), lambda b: (b, 0, 0)),
        ),
        compiler_params=pltpu.CompilerParams(
            dimension_semantics=("parallel",),
            vmem_limit_bytes=int(vmem_limit),
        ),
        cost_estimate=cost,
    )(x_flat, w1t, b1r, w2t, b2r)

    return out_flat.reshape(B, C, H, W)


def se_layer_reference(x, w1, b1, w2, b2):
    """Pure-JAX reference matching the PyTorch module."""
    pooled = jnp.mean(x, axis=(2, 3))                 # (B, C)
    h = jnp.maximum(pooled @ w1.T + b1, 0.0)          # (B, Cr)
    y = jax.nn.sigmoid(h @ w2.T + b2)                 # (B, C)
    return x * y[:, :, None, None]


if __name__ == "__main__":
    B, C, reduction = 4, 32, 16
    Cr = C // reduction

    key = jax.random.PRNGKey(0)
    kx1, kx2, kw1, kb1, kw2, kb2 = jax.random.split(key, 6)

    # PyTorch Linear weight layout: (out_features, in_features).
    w1 = jax.random.normal(kw1, (Cr, C), dtype=jnp.float32) * 0.1
    b1 = jax.random.normal(kb1, (Cr,), dtype=jnp.float32) * 0.1
    w2 = jax.random.normal(kw2, (C, Cr), dtype=jnp.float32) * 0.1
    b2 = jax.random.normal(kb2, (C,), dtype=jnp.float32) * 0.1

    # Case 1: HW = 256 (multiple of 128 -> fully lane-dense loads/stores).
    x1 = jax.random.normal(kx1, (B, C, 16, 16), dtype=jnp.float32)
    out1 = se_layer(x1, w1, b1, w2, b2)
    jax.block_until_ready(out1)
    ref1 = se_layer_reference(x1, w1, b1, w2, b2)
    assert out1.shape == x1.shape
    assert jnp.allclose(out1, ref1, atol=1e-4, rtol=1e-4), "mismatch (HW=256)"

    # Case 2: HW = 196 (not a multiple of 128) -> full-extent block, no
    # wrapper-side pad/slice passes over HBM.
    x2 = jax.random.normal(kx2, (B, C, 14, 14), dtype=jnp.float32)
    out2 = se_layer(x2, w1, b1, w2, b2)
    jax.block_until_ready(out2)
    ref2 = se_layer_reference(x2, w1, b1, w2, b2)
    assert out2.shape == x2.shape
    assert jnp.allclose(out2, ref2, atol=1e-4, rtol=1e-4), "mismatch (HW=196)"

    print("KERNEL_OK")
</pallas_src>

<mosaic_0001>
module attributes {stable_mosaic.version = 11 : i64} {
  func.func @_se_kernel(%arg0: i32, %arg1: memref<2x32x256xf32, #tpu.memory_space<vmem>>, %arg2: memref<32x2xf32, #tpu.memory_space<vmem>>, %arg3: memref<1x2xf32, #tpu.memory_space<vmem>>, %arg4: memref<2x32xf32, #tpu.memory_space<vmem>>, %arg5: memref<1x32xf32, #tpu.memory_space<vmem>>, %arg6: memref<2x32x256xf32, #tpu.memory_space<vmem>>) attributes {dimension_semantics = [#tpu.dimension_semantics<parallel>], iteration_bounds = array<i64: 2>, scalar_prefetch = 0 : i64, scratch_operands = 0 : i64, tpu.core_type = #tpu.core_type<tc>, window_params = [{transform_indices = @transform_0, window_bounds = array<i64: 2, 32, 256>}, {pipeline_mode = #tpu.pipeline_mode<synchronous>, transform_indices = @transform_1, window_bounds = array<i64: 32, 2>}, {pipeline_mode = #tpu.pipeline_mode<synchronous>, transform_indices = @transform_2, window_bounds = array<i64: 1, 2>}, {pipeline_mode = #tpu.pipeline_mode<synchronous>, transform_indices = @transform_3, window_bounds = array<i64: 2, 32>}, {pipeline_mode = #tpu.pipeline_mode<synchronous>, transform_indices = @transform_4, window_bounds = array<i64: 1, 32>}, {transform_indices = @transform_5, window_bounds = array<i64: 2, 32, 256>}]} {
    %c0 = arith.constant 0 : index
    %c0_0 = arith.constant 0 : index
    %c0_1 = arith.constant 0 : index
    %0 = vector.load %arg1[%c0, %c0_0, %c0_1] : memref<2x32x256xf32, #tpu.memory_space<vmem>>, vector<2x32x256xf32>
    %cst = arith.constant dense<0.000000e+00> : vector<2x32xf32>
    %1 = vector.multi_reduction <add>, %0, %cst [2] : vector<2x32x256xf32> to vector<2x32xf32>
    %cst_2 = arith.constant 3.906250e-03 : f32
    %2 = vector.broadcast %cst_2 : f32 to vector<2x32xf32>
    %3 = arith.mulf %1, %2 : vector<2x32xf32>
    %c0_3 = arith.constant 0 : index
    %c0_4 = arith.constant 0 : index
    %4 = vector.load %arg2[%c0_3, %c0_4] : memref<32x2xf32, #tpu.memory_space<vmem>>, vector<32x2xf32>
    %cst_5 = arith.constant dense<0.000000e+00> : vector<2x2xf32>
    %5 = tpu.matmul %3, %4, %cst_5 {dimension_numbers = #tpu.dot_dimension_numbers<[1], [0], [0], [1], [0, 0, 1, 1], [], []>} : vector<2x32xf32>, vector<32x2xf32>, vector<2x2xf32> -> vector<2x2xf32>
    %c0_6 = arith.constant 0 : index
    %c0_7 = arith.constant 0 : index
    %6 = vector.load %arg3[%c0_6, %c0_7] : memref<1x2xf32, #tpu.memory_space<vmem>>, vector<1x2xf32>
    %7 = vector.broadcast %6 : vector<1x2xf32> to vector<2x2xf32>
    %8 = arith.addf %5, %7 : vector<2x2xf32>
    %cst_8 = arith.constant 0.000000e+00 : f32
    %9 = vector.broadcast %cst_8 : f32 to vector<2x2xf32>
    %10 = arith.maximumf %8, %9 : vector<2x2xf32>
    %c0_9 = arith.constant 0 : index
    %c0_10 = arith.constant 0 : index
    %11 = vector.load %arg4[%c0_9, %c0_10] : memref<2x32xf32, #tpu.memory_space<vmem>>, vector<2x32xf32>
    %cst_11 = arith.constant dense<0.000000e+00> : vector<2x32xf32>
    %12 = tpu.matmul %10, %11, %cst_11 {dimension_numbers = #tpu.dot_dimension_numbers<[1], [0], [0], [1], [0, 0, 1, 1], [], []>} : vector<2x2xf32>, vector<2x32xf32>, vector<2x32xf32> -> vector<2x32xf32>
    %c0_12 = arith.constant 0 : index
    %c0_13 = arith.constant 0 : index
    %13 = vector.load %arg5[%c0_12, %c0_13] : memref<1x32xf32, #tpu.memory_space<vmem>>, vector<1x32xf32>
    %14 = vector.broadcast %13 : vector<1x32xf32> to vector<2x32xf32>
    %15 = arith.addf %12, %14 : vector<2x32xf32>
    %16 = arith.negf %15 : vector<2x32xf32>
    %17 = math.exp %16 : vector<2x32xf32>
    %cst_14 = arith.constant 1.000000e+00 : f32
    %18 = vector.broadcast %cst_14 : f32 to vector<2x32xf32>
    %19 = arith.addf %18, %17 : vector<2x32xf32>
    %20 = arith.divf %18, %19 : vector<2x32xf32>
    %21 = vector.shape_cast %20 : vector<2x32xf32> to vector<2x32x1xf32>
    %22 = vector.broadcast %21 : vector<2x32x1xf32> to vector<2x32x256xf32>
    %23 = arith.mulf %0, %22 : vector<2x32x256xf32>
    %c0_15 = arith.constant 0 : index
    %c0_16 = arith.constant 0 : index
    %c0_17 = arith.constant 0 : index
    %24 = vector.load %arg6[%c0_15, %c0_16, %c0_17] : memref<2x32x256xf32, #tpu.memory_space<vmem>>, vector<2x32x256xf32>
    tpu.vector_store %arg6[%c0_15, %c0_16, %c0_17], %23 {strides = array<i32>} : memref<2x32x256xf32, #tpu.memory_space<vmem>>, vector<2x32x256xf32>,
    return
  }
  func.func @transform_0(%arg0: i32) -> (i32, i32, i32) {
    %c0_i32 = arith.constant 0 : i32
    %c0_i32_0 = arith.constant 0 : i32
    %c0_i32_1 = arith.constant 0 : i32
    return %arg0, %c0_i32, %c0_i32_0 : i32, i32, i32
  }
  func.func @transform_1(%arg0: i32) -> (i32, i32) {
    %c0_i32 = arith.constant 0 : i32
    %c0_i32_0 = arith.constant 0 : i32
    %c0_i32_1 = arith.constant 0 : i32
    return %c0_i32, %c0_i32_0 : i32, i32
  }
  func.func @transform_2(%arg0: i32) -> (i32, i32) {
    %c0_i32 = arith.constant 0 : i32
    %c0_i32_0 = arith.constant 0 : i32
    %c0_i32_1 = arith.constant 0 : i32
    return %c0_i32, %c0_i32_0 : i32, i32
  }
  func.func @transform_3(%arg0: i32) -> (i32, i32) {
    %c0_i32 = arith.constant 0 : i32
    %c0_i32_0 = arith.constant 0 : i32
    %c0_i32_1 = arith.constant 0 : i32
    return %c0_i32, %c0_i32_0 : i32, i32
  }
  func.func @transform_4(%arg0: i32) -> (i32, i32) {
    %c0_i32 = arith.constant 0 : i32
    %c0_i32_0 = arith.constant 0 : i32
    %c0_i32_1 = arith.constant 0 : i32
    return %c0_i32, %c0_i32_0 : i32, i32
  }
  func.func @transform_5(%arg0: i32) -> (i32, i32, i32) {
    %c0_i32 = arith.constant 0 : i32
    %c0_i32_0 = arith.constant 0 : i32
    %c0_i32_1 = arith.constant 0 : i32
    return %arg0, %c0_i32, %c0_i32_0 : i32, i32, i32
  }
}

</mosaic_0001>

<llo_original>
// kernel: tpu_custom_call.1
$region0: #{tpu_custom_call.1}
  #allocation0 [shape = 'u32[]', space=smem, size = 0x4, offset = 0x4, fixed_abs, tag = 'smem constant byte address 0x4 - core index']
  #allocation1 [shape = 'u32[72,128]{1,0:T(1,128)}', space=vmem, size = 0x9000, scoped, tag = 'internal scratch']
  %s0 = inlined_call_operand.hbm [shape: f32[4,32,256], index: 0, kind: input, shape index: {}]
  %s1 = inlined_call_operand.vmem [shape: f32[32,2], index: 1, kind: input, shape index: {}]
  %s2 = inlined_call_operand.vmem [shape: f32[1,2], index: 2, kind: input, shape index: {}]
  %s3 = inlined_call_operand.vmem [shape: f32[2,32], index: 3, kind: input, shape index: {}]
  %s4 = inlined_call_operand.vmem [shape: f32[1,32], index: 4, kind: input, shape index: {}]
  %s5 = inlined_call_operand.hbm [shape: f32[4,32,256], index: 5, kind: output, shape index: {}]
  %s6 = sld [smem:[#allocation0]]
  $region57: #{tpu_custom_call.1} parent=0
    _
  %s8 = ssub.s32 1, %s6
  %s9 = scalar_select 0, %s8, %s6
  $region1: #{tpu_custom_call.1} parent=0
    #allocation2 [shape = 'u8[131072]{0}', space=vmem, size = 0x20000, scoped, tag = 'input window, operand 0']
    #allocation3 [shape = 's32[2]{0}', space=sflag, size = 0x8, scoped, tag = 'scoped memory for tpu_custom_call.1']
    #allocation4 [shape = 's32[2]{0}', space=sflag, size = 0x8, scoped, tag = 'scoped memory for tpu_custom_call.1']
    #allocation5 [shape = 'u8[131072]{0}', space=vmem, size = 0x20000, scoped, tag = 'output window, operand 0']
    %10 = vsyncpa [#allocation3], 0
    %s11 = scalar_lea.sflag [#allocation3], 1
    %12 = vsyncpa %s11, 0
    %13 = vsyncpa [#allocation4], 0
    %s14 = scalar_lea.sflag [#allocation4], 1
    %15 = vsyncpa %s14, 0
    loop: start=0, step=1, limit=4
    $region2: #{tpu_custom_call.1} parent=1 // loop_pre_header
      _
    $region3: #{tpu_custom_call.1} parent=1 // loop_header
      %s17 = sphi 0, %s21
      %p18 = scmp.ge.s32.totalorder %s17, 4
      %s27 = sphi 0, %s29
      %s30 = sphi 0, %s27
      %s31 = sphi 0, %s30
      %s47 = sphi 0, %s31
      %s51 = sphi 0, %s51
      %s53 = sphi 0, %s51
      %s54 = sphi 0, %s53
      %s68 = sphi 0, %s54
      %s72 = sphi 0, %s72
      %s74 = sphi 0, %s72
      %s75 = sphi 0, %s74
      %s89 = sphi 0, %s75
      %s93 = sphi 0, %s93
      %s95 = sphi 0, %s93
      %s96 = sphi 0, %s95
      %s110 = sphi 0, %s96
      %s114 = sphi 0, %s114
      %s116 = sphi 0, %s114
      %s117 = sphi 0, %s116
      %s131 = sphi 0, %s117
      %s137 = sphi 0, %s139
      %s140 = sphi 0, %s137
      %s141 = sphi 0, %s140
      %s157 = sphi 0, %s141
    $region4: #{tpu_custom_call.1} parent=1 // loop_header_branch
      %20 = sbr.rel (%p18) target = $region8
    $region5: #{tpu_custom_call.1} parent=1 // loop_body
      %s22 = ssub.s32 %s17, 1
      %s23 = ssub.s32 %s17, 2
      %s24 = sadd.s32 %s17, 1
      %s25 = ssub.s32 %s17, %s24
      %p26 = scmp.eq.s32.totalorder %s25, 0
      %s28 = sadd.s32 %s27, 1
      %s29 = scalar_select %p26, %s27, %s28
      %p32 = pneg %p26
      %p33 = scmp.eq.s32.totalorder %s17, 1
      %p34 = por %p32, %p33
      %p35 = scmp.ne.s32.totalorder %s27, %s30
      %p36 = scmp.eq.s32.totalorder %s17, 0
      %p37 = por %p35, %p36
      %p38 = scmp.ne.s32.totalorder %s27, %s30
      %p39 = scmp.eq.s32.totalorder %s22, 1
      %p40 = por %p38, %p39
      %p41 = scmp.ne.s32.totalorder %s30, %s31
      %p42 = scmp.eq.s32.totalorder %s22, 0
      %p43 = por %p41, %p42
      %p44 = scmp.ne.s32.totalorder %s30, %s31
      %p45 = scmp.eq.s32.totalorder %s23, 1
      %p46 = por %p44, %p45
      %p48 = scmp.ne.s32.totalorder %s31, %s47
      %p49 = scmp.eq.s32.totalorder %s23, 0
      %p50 = por %p48, %p49
      %s52 = sadd.s32 %s51, 1
      %p55 = scmp.eq.s32.totalorder %s17, 1
      %p56 = scmp.ne.s32.totalorder %s51, %s53
      %p57 = scmp.eq.s32.totalorder %s17, 0
      %p58 = por %p56, %p57
      %p59 = scmp.ne.s32.totalorder %s51, %s53
      %p60 = scmp.eq.s32.totalorder %s22, 1
      %p61 = por %p59, %p60
      %p62 = scmp.ne.s32.totalorder %s53, %s54
      %p63 = scmp.eq.s32.totalorder %s22, 0
      %p64 = por %p62, %p63
      %p65 = scmp.ne.s32.totalorder %s53, %s54
      %p66 = scmp.eq.s32.totalorder %s23, 1
      %p67 = por %p65, %p66
      %p69 = scmp.ne.s32.totalorder %s54, %s68
      %p70 = scmp.eq.s32.totalorder %s23, 0
      %p71 = por %p69, %p70
      %s73 = sadd.s32 %s72, 1
      %p76 = scmp.eq.s32.totalorder %s17, 1
      %p77 = scmp.ne.s32.totalorder %s72, %s74
      %p78 = scmp.eq.s32.totalorder %s17, 0
      %p79 = por %p77, %p78
      %p80 = scmp.ne.s32.totalorder %s72, %s74
      %p81 = scmp.eq.s32.totalorder %s22, 1
      %p82 = por %p80, %p81
      %p83 = scmp.ne.s32.totalorder %s74, %s75
      %p84 = scmp.eq.s32.totalorder %s22, 0
      %p85 = por %p83, %p84
      %p86 = scmp.ne.s32.totalorder %s74, %s75
      %p87 = scmp.eq.s32.totalorder %s23, 1
      %p88 = por %p86, %p87
      %p90 = scmp.ne.s32.totalorder %s75, %s89
      %p91 = scmp.eq.s32.totalorder %s23, 0
      %p92 = por %p90, %p91
      %s94 = sadd.s32 %s93, 1
      %p97 = scmp.eq.s32.totalorder %s17, 1
      %p98 = scmp.ne.s32.totalorder %s93, %s95
      %p99 = scmp.eq.s32.totalorder %s17, 0
      %p100 = por %p98, %p99
      %p101 = scmp.ne.s32.totalorder %s93, %s95
      %p102 = scmp.eq.s32.totalorder %s22, 1
      %p103 = por %p101, %p102
      %p104 = scmp.ne.s32.totalorder %s95, %s96
      %p105 = scmp.eq.s32.totalorder %s22, 0
      %p106 = por %p104, %p105
      %p107 = scmp.ne.s32.totalorder %s95, %s96
      %p108 = scmp.eq.s32.totalorder %s23, 1
      %p109 = por %p107, %p108
      %p111 = scmp.ne.s32.totalorder %s96, %s110
      %p112 = scmp.eq.s32.totalorder %s23, 0
      %p113 = por %p111, %p112
      %s115 = sadd.s32 %s114, 1
      %p118 = scmp.eq.s32.totalorder %s17, 1
      %p119 = scmp.ne.s32.totalorder %s114, %s116
      %p120 = scmp.eq.s32.totalorder %s17, 0
      %p121 = por %p119, %p120
      %p122 = scmp.ne.s32.totalorder %s114, %s116
      %p123 = scmp.eq.s32.totalorder %s22, 1
      %p124 = por %p122, %p123
      %p125 = scmp.ne.s32.totalorder %s116, %s117
      %p126 = scmp.eq.s32.totalorder %s22, 0
      %p127 = por %p125, %p126
      %p128 = scmp.ne.s32.totalorder %s116, %s117
      %p129 = scmp.eq.s32.totalorder %s23, 1
      %p130 = por %p128, %p129
      %p132 = scmp.ne.s32.totalorder %s117, %s131
      %p133 = scmp.eq.s32.totalorder %s23, 0
      %p134 = por %p132, %p133
      %s135 = ssub.s32 %s17, %s24
      %p136 = scmp.eq.s32.totalorder %s135, 0
      %s138 = sadd.s32 %s137, 1
      %s139 = scalar_select %p136, %s137, %s138
      %p142 = pneg %p136
      %p143 = scmp.eq.s32.totalorder %s17, 1
      %p144 = por %p142, %p143
      %p145 = scmp.ne.s32.totalorder %s137, %s140
      %p146 = scmp.eq.s32.totalorder %s17, 0
      %p147 = por %p145, %p146
      %p148 = scmp.ne.s32.totalorder %s137, %s140
      %p149 = scmp.eq.s32.totalorder %s22, 1
      %p150 = por %p148, %p149
      %p151 = scmp.ne.s32.totalorder %s140, %s141
      %p152 = scmp.eq.s32.totalorder %s22, 0
      %p153 = por %p151, %p152
      %p154 = scmp.ne.s32.totalorder %s140, %s141
      %p155 = scmp.eq.s32.totalorder %s23, 1
      %p156 = por %p154, %p155
      %p158 = scmp.ne.s32.totalorder %s141, %s157
      %p159 = scmp.eq.s32.totalorder %s23, 0
      %p160 = por %p158, %p159
      %p161 = scmp.le.s32.totalorder 1, %s17
      %p162 = scmp.lt.s32.totalorder %s17, 3
      %p163 = pnand %p161, %p162
      %p164 = pneg %p163
      // Predicated region
      $region9: #{tpu_custom_call.1} parent=5 // pred_check
        _
      $region10: #{tpu_custom_call.1} parent=5 // pred_check_branch
        %166 = sbr.rel (%p163) target = $region12
      $region11: #{tpu_custom_call.1} parent=5 // pred_region
        %s167 = ssub.s32 %s17, 1
        // Predicated region
        $region13: #{tpu_custom_call.1} parent=11 // pred_check
          %p168 = pneg %p64
        $region14: #{tpu_custom_call.1} parent=11 // pred_check_branch
          %170 = sbr.rel (%p168) target = $region16
        $region15: #{tpu_custom_call.1} parent=11 // pred_region
          _
        $region16: #{tpu_custom_call.1} parent=11 // pred_fallthru
          _
        // Predicated region
        $region17: #{tpu_custom_call.1} parent=11 // pred_check
          %p171 = pneg %p85
        $region18: #{tpu_custom_call.1} parent=11 // pred_check_branch
          %173 = sbr.rel (%p171) target = $region20
        $region19: #{tpu_custom_call.1} parent=11 // pred_region
          _
        $region20: #{tpu_custom_call.1} parent=11 // pred_fallthru
          _
        // Predicated region
        $region21: #{tpu_custom_call.1} parent=11 // pred_check
          %p174 = pneg %p106
        $region22: #{tpu_custom_call.1} parent=11 // pred_check_branch
          %176 = sbr.rel (%p174) target = $region24
        $region23: #{tpu_custom_call.1} parent=11 // pred_region
          _
        $region24: #{tpu_custom_call.1} parent=11 // pred_fallthru
          _
        // Predicated region
        $region25: #{tpu_custom_call.1} parent=11 // pred_check
          %p177 = pneg %p127
        $region26: #{tpu_custom_call.1} parent=11 // pred_check_branch
          %179 = sbr.rel (%p177) target = $region28
        $region27: #{tpu_custom_call.1} parent=11 // pred_region
          _
        $region28: #{tpu_custom_call.1} parent=11 // pred_fallthru
          _
      $region12: #{tpu_custom_call.1} parent=5 // pred_fallthru
        _
      %p180 = scmp.lt.s32.totalorder %s17, 2
      // Predicated region
      $region29: #{tpu_custom_call.1} parent=5 // pred_check
        %p181 = pneg %p180
      $region30: #{tpu_custom_call.1} parent=5 // pred_check_branch
        %183 = sbr.rel (%p181) target = $region32
      $region31: #{tpu_custom_call.1} parent=5 // pred_region
        // Predicated region
        $region33: #{tpu_custom_call.1} parent=31 // pred_check
          %p184 = pneg %p37
        $region34: #{tpu_custom_call.1} parent=31 // pred_check_branch
          %186 = sbr.rel (%p184) target = $region36
        $region35: #{tpu_custom_call.1} parent=31 // pred_region
          %s187 = sand.u32 %s27, 1
          %s188 = scalar_lea.sflag [#allocation3], %s187
          %s189 = sand.u32 %s27, 1
          %s190 = smul.addr %s189, 128
          %s191 = scalar_lea.vmem [#allocation2], %s190
          %s192 = smul.u32 2, %s17
          %194 = vsyncadd %s188, 0
          %s195 = smul.addr %s192, 8
          %s196 = smul.addr %s195, 8
          %s197 = scalar_lea.hbm %s0, %s196
          %s198 = sshll.u32 %s197, 4
          %s199 = int_to_ptr.hbm [resolvable:$true] %s198
          %s200 = sshll.u32 %s191, 4
          %s201 = int_to_ptr.vmem [resolvable:$true] %s200
          %206 = dma.hbm_to_vmem [thread:$0]  %s199, 2048, %s201, %s188, 256, 256, 16
        $region36: #{tpu_custom_call.1} parent=31 // pred_fallthru
          _
      $region32: #{tpu_custom_call.1} parent=5 // pred_fallthru
        _
      %p207 = scmp.le.s32.totalorder 1, %s17
      %p208 = scmp.lt.s32.totalorder %s17, 3
      %p209 = pnand %p207, %p208
      %p210 = pneg %p209
      // Predicated region
      $region37: #{tpu_custom_call.1} parent=5 // pred_check
        _
      $region38: #{tpu_custom_call.1} parent=5 // pred_check_branch
        %212 = sbr.rel (%p209) target = $region40
      $region39: #{tpu_custom_call.1} parent=5 // pred_region
        %s213 = ssub.s32 %s17, 1
        %s214 = sand.u32 %s30, 1
        %s215 = scalar_lea.sflag [#allocation3], %s214
        %s216 = sand.u32 %s30, 1
        %s217 = smul.addr %s216, 128
        %s218 = scalar_lea.vmem [#allocation2], %s217
        // Predicated region
        $region41: #{tpu_custom_call.1} parent=39 // pred_check
          %p219 = pneg %p43
        $region42: #{tpu_custom_call.1} parent=39 // pred_check_branch
          %221 = sbr.rel (%p219) target = $region44
        $region43: #{tpu_custom_call.1} parent=39 // pred_region
          %223 = dma.done %s215, 2048
        $region44: #{tpu_custom_call.1} parent=39 // pred_fallthru
          _
        %s224 = sand.u32 %s30, 1
        %s225 = scalar_lea.sflag [#allocation3], %s224
        %s226 = sand.u32 %s30, 1
        %s227 = smul.addr %s226, 128
        %s228 = scalar_lea.vmem [#allocation2], %s227
        %p229 = pneg %p43
        %p230 = pneg %p40
        %p231 = pneg %p64
        %p232 = pneg %p61
        %p233 = pneg %p85
        %p234 = pneg %p82
        %p235 = pneg %p106
        %p236 = pneg %p103
        %p237 = pneg %p127
        %p238 = pneg %p124
        %p239 = pneg %p153
        %p240 = pneg %p150
        %s241 = sand.u32 %s140, 1
        %s242 = scalar_lea.sflag [#allocation4], %s241
        %s243 = sand.u32 %s140, 1
        %s244 = smul.addr %s243, 128
        %s245 = scalar_lea.vmem [#allocation5], %s244
        %s246 = smul.u32 2, %s22
        %s247 = smul.u32 2, %s22
        %v248 = vld [vmem:[%s218] sm:$0xff]
        %v249 = vld [vmem:[%s218 + $0x8] sm:$0xff]
        %v250 = vld [vmem:[%s218 + $0x10] sm:$0xff]
        %v251 = vld [vmem:[%s218 + $0x18] sm:$0xff]
        %v252 = vld [vmem:[%s218 + $0x20] sm:$0xff]
        %v253 = vld [vmem:[%s218 + $0x28] sm:$0xff]
        %v254 = vld [vmem:[%s218 + $0x30] sm:$0xff]
        %v255 = vld [vmem:[%s218 + $0x38] sm:$0xff]
        %v256 = vld [vmem:[%s218 + $0x40] sm:$0xff]
        %v257 = vld [vmem:[%s218 + $0x48] sm:$0xff]
        %v258 = vld [vmem:[%s218 + $0x50] sm:$0xff]
        %v259 = vld [vmem:[%s218 + $0x58] sm:$0xff]
        %v260 = vld [vmem:[%s218 + $0x60] sm:$0xff]
        %v261 = vld [vmem:[%s218 + $0x68] sm:$0xff]
        %v262 = vld [vmem:[%s218 + $0x70] sm:$0xff]
        %v263 = vld [vmem:[%s218 + $0x78] sm:$0xff]
        %v264 = vadd.f32 %v248, %v249
        %265 = vadd.xlane.f32.xlu0 %v264
        %v266 = vpop.xlane.xlu0 %265
        %v267 = vadd.f32 %v250, %v251
        %268 = vadd.xlane.f32.xlu0 %v267
        %v269 = vpop.xlane.xlu0 %268
        %v270 = vadd.f32 %v252, %v253
        %271 = vadd.xlane.f32.xlu0 %v270
        %v272 = vpop.xlane.xlu0 %271
        %v273 = vadd.f32 %v254, %v255
        %274 = vadd.xlane.f32.xlu0 %v273
        %v275 = vpop.xlane.xlu0 %274
        %v276 = vadd.f32 %v256, %v257
        %277 = vadd.xlane.f32.xlu0 %v276
        %v278 = vpop.xlane.xlu0 %277
        %v279 = vadd.f32 %v258, %v259
        %280 = vadd.xlane.f32.xlu0 %v279
        %v281 = vpop.xlane.xlu0 %280
        %v282 = vadd.f32 %v260, %v261
        %283 = vadd.xlane.f32.xlu0 %v282
        %v284 = vpop.xlane.xlu0 %283
        %v285 = vadd.f32 %v262, %v263
        %286 = vadd.xlane.f32.xlu0 %v285
        %v287 = vpop.xlane.xlu0 %286
        %v288 = vmul.f32 %v266, 0.00390625
        %v289 = vmul.f32 %v269, 0.00390625
        %v290 = vmul.f32 %v272, 0.00390625
        %v291 = vmul.f32 %v275, 0.00390625
        %v292 = vmul.f32 %v278, 0.00390625
        %v293 = vmul.f32 %v281, 0.00390625
        %v294 = vmul.f32 %v284, 0.00390625
        %v295 = vmul.f32 %v287, 0.00390625
        %v296 = vld [vmem:[%s1] sm:$0xff]
        %v297 = vld [vmem:[%s1 + $0x8] sm:$0xff]
        %v298 = vld [vmem:[%s1 + $0x10] sm:$0xff]
        %v299 = vld [vmem:[%s1 + $0x18] sm:$0xff]
        %v300 = vld [vmem:[%s2] sm:$0x1]
        %v302 = vperm.slane %v300, 0
        %v312 = vlaneseq
        %v313 = vand.u32 %v312, 127
        %v314 = vperm.slane %v288, %v313
        %v315 = vadd.s32 %v313, 4294967288
        %v316 = vperm.slane %v289, %v315
        %vm317 = vcmask 130112
        %v318 = vsel %vm317, %v316, %v314
        %v319 = vadd.s32 %v313, 4294967280
        %v320 = vperm.slane %v290, %v319
        %vm321 = vcmask 195712
        %v322 = vsel %vm321, %v320, %v318
        %v323 = vadd.s32 %v313, 4294967272
        %v324 = vperm.slane %v291, %v323
        %vm325 = vcmask 261312
        %v326 = vsel %vm325, %v324, %v322
        %v327 = vperm.slane %v292, %v313
        %v328 = vperm.slane %v293, %v315
        %v329 = vsel %vm317, %v328, %v327
        %v330 = vperm.slane %v294, %v319
        %v331 = vsel %vm321, %v330, %v329
        %v332 = vperm.slane %v295, %v323
        %v333 = vsel %vm325, %v332, %v331
        %vm334 = vcmask 1041409
        %v335 = vsel %vm334, %v333, %v326
        %vm336 = vcmask 261120
        %v337 = vsel %vm336, %v335, 0
        %339 = vmatpush.msra.mxu0 0.0
        %340 = vmatpush.msra.mxu0 0.0
        %341 = vmatpush.msra.mxu0 0.0
        %342 = vmatpush.msra.mxu0 0.0
        %343 = vmatpush.msra.mxu0 0.0
        %344 = vmatpush.msra.mxu0 0.0
        %345 = vmatpush.msra.mxu0 0.0
        %346 = vmatpush.msra.mxu0 0.0
        %347 = vmatpush.msra.mxu0 0.0
        %348 = vmatpush.msra.mxu0 0.0
        %349 = vmatpush.msra.mxu0 0.0
        %350 = vmatpush.msra.mxu0 0.0
        %351 = vmatpush.msra.mxu0 %v299
        %352 = vmatpush.msra.mxu0 %v298
        %353 = vmatpush.msra.mxu0 %v297
        %354 = vmatpush.msra.mxu0 %v296
        %355 = vmatmul.f32.gmra.mxu0 %v337
        %v356 = vpop.f32.mrf.mxu0
        %v357 = vadd.f32 %v302, %v356
        %358 = vdwg.mxu0
        %v359 = vmax.f32 %v357, 0.0
        %v360 = vld [vmem:[%s3] sm:$0x3]
        %v361 = vld [vmem:[%s4] sm:$0x1]
        %v363 = vperm.slane %v361, 0
        %vm365 = vcmask 15360
        %v367 = vsel %vm365, %v359, 0
        %vm369 = vcmask 1041408
        %v371 = vsel %vm369, %v360, 0
        %373 = vmatpush.msra.mxu0 0.0
        %374 = vmatpush.msra.mxu0 0.0
        %375 = vmatpush.msra.mxu0 0.0
        %376 = vmatpush.msra.mxu0 0.0
        %377 = vmatpush.msra.mxu0 0.0
        %378 = vmatpush.msra.mxu0 0.0
        %379 = vmatpush.msra.mxu0 0.0
        %380 = vmatpush.msra.mxu0 0.0
        %381 = vmatpush.msra.mxu0 0.0
        %382 = vmatpush.msra.mxu0 0.0
        %383 = vmatpush.msra.mxu0 0.0
        %384 = vmatpush.msra.mxu0 0.0
        %385 = vmatpush.msra.mxu0 0.0
        %386 = vmatpush.msra.mxu0 0.0
        %387 = vmatpush.msra.mxu0 0.0
        %388 = vmatpush.msra.mxu0 %v371
        %389 = vmatmul.f32.gmra.mxu0 %v367
        %v390 = vpop.f32.mrf.mxu0
        %v391 = vadd.f32 %v363, %v390
        %392 = vdwg.mxu0
        %v393 = vxor.u32 %v391, 2147483648
        %v394 = vmul.f32 %v393, 1.442695
        %v395 = vpow.pop %v394
        %v396 = vadd.f32 %v395, 1.0
        %v397 = vrcp.pop %v396
        %v398 = vmul.f32 %v396, %v397
        %v399 = vsub.f32 1.0, %v398
        %v400 = vmul.f32 %v397, %v399
        %v401 = vadd.f32 %v397, %v400
        %vm402 = vweird.f32 %v396
        %vm403 = vweird.f32 %v397
        %vm404 = vmor %vm402, %vm403
        %v405 = vsel %vm404, %v397, %v401
        %v406 = vand.u32 2147483647, %v396
        %vm407 = vcmp.eq.f32.partialorder %v406, 8.507059e+37
        %v408 = vand.u32 %v396, 2147483648
        %v409 = vor.u32 1.1754944e-38, %v408
        %v410 = vsel %vm407, %v409, %v405
        %v411 = vmul.f32 1.0, %v410
        %v412 = vperm.slane %v411, 0
        %v413 = vlaneseq
        %v414 = vshrl.u32 %v413, 7
        %416 = vset.pattern.permute.xlu0 %v414
        %417 = vperm.xlu0 %416, %v412
        %v418 = vpop.permute.xlu0 %417
        %v419 = vlaneseq
        %v420 = vshrl.u32 %v419, 7
        %v421 = vadd.s32 %v420, 8
        %422 = vset.pattern.permute.xlu0 %v421
        %423 = vperm.xlu0 %422, %v412
        %v424 = vpop.permute.xlu0 %423
        %v425 = vlaneseq
        %v426 = vshrl.u32 %v425, 7
        %v427 = vadd.s32 %v426, 16
        %428 = vset.pattern.permute.xlu0 %v427
        %429 = vperm.xlu0 %428, %v412
        %v430 = vpop.permute.xlu0 %429
        %v431 = vlaneseq
        %v432 = vshrl.u32 %v431, 7
        %v433 = vadd.s32 %v432, 24
        %434 = vset.pattern.permute.xlu0 %v433
        %435 = vperm.xlu0 %434, %v412
        %v436 = vpop.permute.xlu0 %435
        %v437 = vperm.slane %v411, 1
        %v438 = vlaneseq
        %v439 = vshrl.u32 %v438, 7
        %441 = vset.pattern.permute.xlu0 %v439
        %442 = vperm.xlu0 %441, %v437
        %v443 = vpop.permute.xlu0 %442
        %v444 = vlaneseq
        %v445 = vshrl.u32 %v444, 7
        %v446 = vadd.s32 %v445, 8
        %447 = vset.pattern.permute.xlu0 %v446
        %448 = vperm.xlu0 %447, %v437
        %v449 = vpop.permute.xlu0 %448
        %v450 = vlaneseq
        %v451 = vshrl.u32 %v450, 7
        %v452 = vadd.s32 %v451, 16
        %453 = vset.pattern.permute.xlu0 %v452
        %454 = vperm.xlu0 %453, %v437
        %v455 = vpop.permute.xlu0 %454
        %v456 = vlaneseq
        %v457 = vshrl.u32 %v456, 7
        %v458 = vadd.s32 %v457, 24
        %459 = vset.pattern.permute.xlu0 %v458
        %460 = vperm.xlu0 %459, %v437
        %v461 = vpop.permute.xlu0 %460
        %v462 = vmul.f32 %v248, %v418
        %v463 = vmul.f32 %v249, %v418
        %v464 = vmul.f32 %v250, %v424
        %v465 = vmul.f32 %v251, %v424
        %v466 = vmul.f32 %v252, %v430
        %v467 = vmul.f32 %v253, %v430
        %v468 = vmul.f32 %v254, %v436
        %v469 = vmul.f32 %v255, %v436
        %v470 = vmul.f32 %v256, %v443
        %v471 = vmul.f32 %v257, %v443
        %v472 = vmul.f32 %v258, %v449
        %v473 = vmul.f32 %v259, %v449
        %v474 = vmul.f32 %v260, %v455
        %v475 = vmul.f32 %v261, %v455
        %v476 = vmul.f32 %v262, %v461
        %v477 = vmul.f32 %v263, %v461
        %478 = vst [vmem:[%s245] sm:$0xff] %v462
        %479 = vst [vmem:[%s245 + $0x8] sm:$0xff] %v463
        %480 = vst [vmem:[%s245 + $0x10] sm:$0xff] %v464
        %481 = vst [vmem:[%s245 + $0x18] sm:$0xff] %v465
        %482 = vst [vmem:[%s245 + $0x20] sm:$0xff] %v466
        %483 = vst [vmem:[%s245 + $0x28] sm:$0xff] %v467
        %484 = vst [vmem:[%s245 + $0x30] sm:$0xff] %v468
        %485 = vst [vmem:[%s245 + $0x38] sm:$0xff] %v469
        %486 = vst [vmem:[%s245 + $0x40] sm:$0xff] %v470
        %487 = vst [vmem:[%s245 + $0x48] sm:$0xff] %v471
        %488 = vst [vmem:[%s245 + $0x50] sm:$0xff] %v472
        %489 = vst [vmem:[%s245 + $0x58] sm:$0xff] %v473
        %490 = vst [vmem:[%s245 + $0x60] sm:$0xff] %v474
        %491 = vst [vmem:[%s245 + $0x68] sm:$0xff] %v475
        %492 = vst [vmem:[%s245 + $0x70] sm:$0xff] %v476
        %493 = vst [vmem:[%s245 + $0x78] sm:$0xff] %v477
        %s494 = sand.u32 %s140, 1
        %s495 = scalar_lea.sflag [#allocation4], %s494
        %s496 = sand.u32 %s140, 1
        %s497 = smul.addr %s496, 128
        %s498 = scalar_lea.vmem [#allocation5], %s497
        // Predicated region
        $region45: #{tpu_custom_call.1} parent=39 // pred_check
          %p499 = pneg %p150
        $region46: #{tpu_custom_call.1} parent=39 // pred_check_branch
          %501 = sbr.rel (%p499) target = $region48
        $region47: #{tpu_custom_call.1} parent=39 // pred_region
          %s502 = smul.u32 2, %s22
          %504 = vsyncadd %s495, 0
          %s505 = smul.addr %s502, 8
          %s506 = smul.addr %s505, 8
          %s507 = scalar_lea.hbm %s5, %s506
          %s508 = sshll.u32 %s498, 4
          %s509 = int_to_ptr.vmem [resolvable:$true] %s508
          %s510 = sshll.u32 %s507, 4
          %s511 = int_to_ptr.hbm [resolvable:$true] %s510
          %516 = dma.vmem_to_hbm [thread:$0]  %s509, 2048, %s511, %s495, 256, 256, 16
        $region48: #{tpu_custom_call.1} parent=39 // pred_fallthru
          _
      $region40: #{tpu_custom_call.1} parent=5 // pred_fallthru
        _
      %p517 = scmp.le.s32.totalorder 2, %s17
      // Predicated region
      $region49: #{tpu_custom_call.1} parent=5 // pred_check
        %p518 = pneg %p517
      $region50: #{tpu_custom_call.1} parent=5 // pred_check_branch
        %520 = sbr.rel (%p518) target = $region52
      $region51: #{tpu_custom_call.1} parent=5 // pred_region
        %s521 = ssub.s32 %s17, 2
        // Predicated region
        $region53: #{tpu_custom_call.1} parent=51 // pred_check
          %p522 = pneg %p156
        $region54: #{tpu_custom_call.1} parent=51 // pred_check_branch
          %524 = sbr.rel (%p522) target = $region56
        $region55: #{tpu_custom_call.1} parent=51 // pred_region
          %s525 = sand.u32 %s141, 1
          %s526 = scalar_lea.sflag [#allocation4], %s525
          %s527 = sand.u32 %s141, 1
          %s528 = smul.addr %s527, 128
          %s529 = scalar_lea.vmem [#allocation5], %s528
          %531 = dma.done %s526, 2048
        $region56: #{tpu_custom_call.1} parent=51 // pred_fallthru
          _
      $region52: #{tpu_custom_call.1} parent=5 // pred_fallthru
        _
    $region6: #{tpu_custom_call.1} parent=1 // loop_footer
      %s21 = sadd.s32 1, %s17
    $region7: #{tpu_custom_call.1} parent=1 // loop_footer_branch
      %16 = sbr.rel target = $region3
    $region8: #{tpu_custom_call.1} parent=1 // loop_exit
      _
    %532 = vsyncpa [#allocation3], 1
    %s533 = scalar_lea.sflag [#allocation3], 1
    %534 = vsyncpa %s533, 1
    %535 = vsyncpa [#allocation4], 1
    %s536 = scalar_lea.sflag [#allocation4], 1
    %537 = vsyncpa %s536, 1

</llo_original>
